<compile_context>
chip_gen: v7x
topology: tpu7x:2x2x1
jax: 0.10.0
libtpu: 0.0.40
codegen_flags: <defaults>
</compile_context>

<pallas_src>
import functools

import jax
import jax.numpy as jnp
from jax.experimental import pallas as pl
from jax.experimental.pallas import tpu as pltpu

_LANES = 128
_SUBLANES = 8
_MIN_TILE = _SUBLANES * _LANES  # 1024 elements = one (8,128) f32 tile


def _wmape_kernel(yp_ref, yt_ref, w_ref, part_ref, *, n_valid, tile_rows,
                  tiles_per_split, chunk_rows):
    """Accumulate numerator / denominator partials for one (split, tile) step.

    grid = (n_splits, tiles_per_split); axis 1 is the reduction axis.
    part_ref: (2, 8, 128) f32 output block (one per split), resident across
    the reduction axis; row 0 = numerator partials, row 1 = denominator.
    """
    s = pl.program_id(0)
    j = pl.program_id(1)

    @pl.when(j == 0)
    def _init():
        part_ref[...] = jnp.zeros_like(part_ref)

    # Unclamped linear block index -> global row offset of this block.  For
    # overhang blocks (clamped in the index_map) this offset is >= n_valid,
    # so every element is masked and the stale data read is irrelevant.
    block_row0 = (s * tiles_per_split + j) * tile_rows
    n_chunks = tile_rows // chunk_rows

    def body(c, carry):
        r0 = pl.multiple_of(c * chunk_rows, chunk_rows)
        rows = pl.ds(r0, chunk_rows)
        yp = yp_ref[rows, :].astype(jnp.float32)
        yt = yt_ref[rows, :].astype(jnp.float32)
        w = w_ref[rows, :].astype(jnp.float32)

        # Element-index mask for the ragged tail (covers both the <128-lane
        # remainder and rows past the logical array end).  int32 indices are
        # fine for n < 2^31 elements.
        row_iota = jax.lax.broadcasted_iota(jnp.int32, (chunk_rows, _LANES), 0)
        lane_iota = jax.lax.broadcasted_iota(jnp.int32, (chunk_rows, _LANES), 1)
        base = (block_row0 + c * chunk_rows) * _LANES
        valid = (row_iota * _LANES + lane_iota + base) < n_valid

        num = jnp.where(valid, jnp.abs(yp - yt) * w, 0.0)
        den = jnp.where(valid, jnp.abs(yt), 0.0)

        # Full-vreg VPU accumulation: reduce over the major (row-group) axis
        # only; the cross-sublane/cross-lane reduce happens in the wrapper.
        part_ref[0] += num.reshape(-1, _SUBLANES, _LANES).sum(axis=0)
        part_ref[1] += den.reshape(-1, _SUBLANES, _LANES).sum(axis=0)
        return carry

    jax.lax.fori_loop(0, n_chunks, body, 0, unroll=True)


def wmape(y_pred, y_true, weights, eps=1e-9, *, tile_rows=8192, chunk_rows=512,
          n_splits=1, core_parallel=False):
    """WMAPE of arbitrary-shaped inputs. Pass n_splits=2, core_parallel=True on v7x."""
    assert y_pred.shape == y_true.shape == weights.shape
    n = int(y_pred.size)
    assert n > 0

    # Minimal padding: only up to one (8,128) tile, and only for ragged sizes
    # (typical NN tensor sizes are multiples of 1024 and take the no-copy path).
    padded_n = pl.cdiv(n, _MIN_TILE) * _MIN_TILE
    pad = padded_n - n
    rows = padded_n // _LANES

    def _prep(x):
        x = x.reshape(-1)            # native dtype; cast happens per-chunk in-kernel
        if pad:
            x = jnp.pad(x, (0, pad))  # padded values are masked in-kernel anyway
        return x.reshape(rows, _LANES)

    yp2, yt2, w2 = _prep(y_pred), _prep(y_true), _prep(weights)

    # Tile sizing: rows are multiples of 8; clamp to the array; chunk divides tile.
    tile_rows = max(_SUBLANES, (int(tile_rows) // _SUBLANES) * _SUBLANES)
    tile_rows = min(tile_rows, rows)
    chunk_rows = max(_SUBLANES,
                     (min(int(chunk_rows), tile_rows) // _SUBLANES) * _SUBLANES)
    tile_rows = (tile_rows // chunk_rows) * chunk_rows

    tiles_total = pl.cdiv(rows, tile_rows)
    n_splits = max(1, int(n_splits))
    tiles_per_split = pl.cdiv(tiles_total, n_splits)
    last_block = tiles_total - 1

    def in_idx(s, j):
        b = s * tiles_per_split + j
        # Clamp keeps the DMA in-bounds for overhang blocks of uneven splits;
        # the kernel masks their contribution to exactly zero.
        return (jnp.minimum(b, last_block), 0)

    in_spec = pl.BlockSpec((tile_rows, _LANES), in_idx)
    out_spec = pl.BlockSpec((None, 2, _SUBLANES, _LANES), lambda s, j: (s, 0, 0, 0))

    if core_parallel:
        # v7x: shard the leading split axis across the two TensorCores.  Each
        # split writes its own output block, so there is no cross-core race.
        dims = (pltpu.CORE_PARALLEL, pltpu.ARBITRARY)
    else:
        dims = ("parallel", "arbitrary")

    bytes_in = n * (y_pred.dtype.itemsize + y_true.dtype.itemsize
                    + weights.dtype.itemsize)
    cost = pl.CostEstimate(
        flops=6 * n,
        transcendentals=0,
        bytes_accessed=bytes_in + n_splits * 2 * _SUBLANES * _LANES * 4,
    )

    kernel = functools.partial(
        _wmape_kernel, n_valid=n, tile_rows=tile_rows,
        tiles_per_split=tiles_per_split, chunk_rows=chunk_rows)

    parts = pl.pallas_call(
        kernel,
        out_shape=jax.ShapeDtypeStruct((n_splits, 2, _SUBLANES, _LANES),
                                       jnp.float32),
        grid_spec=pltpu.PrefetchScalarGridSpec(
            num_scalar_prefetch=0,
            grid=(n_splits, tiles_per_split),
            in_specs=[in_spec, in_spec, in_spec],
            out_specs=out_spec,
        ),
        compiler_params=pltpu.CompilerParams(
            dimension_semantics=dims,
            vmem_limit_bytes=48 * 1024 * 1024,
        ),
        cost_estimate=cost,
    )(yp2, yt2, w2)

    # Single cross-sublane/cross-lane/cross-split reduce, hoisted eps, divide.
    # eps*n computed in Python float64 for bit-stability at large n.
    num = parts[:, 0].sum()
    den = parts[:, 1].sum() + jnp.float32(float(eps) * float(n))
    return num / den


def wmape_ref(y_pred, y_true, weights, eps=1e-9):
    # Matches the PyTorch module exactly (eps added per element of y_true).
    return (jnp.abs(y_pred - y_true) * weights).sum() / (eps + jnp.abs(y_true)).sum()


if __name__ == "__main__":
    key = jax.random.PRNGKey(0)
    k1, k2, k3, k4 = jax.random.split(key, 4)

    # NCHW inputs, as the PyTorch forward would receive them.
    shape = (2, 4, 16, 16)
    y_pred = jax.random.normal(k1, shape, dtype=jnp.float32)
    y_true = jax.random.normal(k2, shape, dtype=jnp.float32)
    weights = (jnp.arange(y_pred.size, dtype=jnp.float32).reshape(shape) % 7 + 1.0) / 7.0

    out = wmape(y_pred, y_true, weights)
    jax.block_until_ready(out)
    ref = wmape_ref(y_pred, y_true, weights)
    assert jnp.allclose(out, ref, rtol=1e-5, atol=1e-6), (out, ref)

    # Ragged element count: exercises minimal padding + in-kernel tail masking
    # and multi-tile accumulation.
    big = (3, 5, 37, 53)
    yp_b = jax.random.normal(k3, big, dtype=jnp.float32)
    yt_b = jax.random.normal(k4, big, dtype=jnp.float32)
    w_b = (jnp.arange(yp_b.size, dtype=jnp.float32).reshape(big) % 5 + 1.0) / 5.0
    out_b = wmape(yp_b, yt_b, w_b, tile_rows=64, chunk_rows=32)
    jax.block_until_ready(out_b)
    ref_b = wmape_ref(yp_b, yt_b, w_b)
    assert jnp.allclose(out_b, ref_b, rtol=1e-5, atol=1e-6), (out_b, ref_b)

    # Native bf16 inputs (no wrapper-side astype) + multi-split path, which
    # exercises the clamped index_map and fully-masked overhang blocks.
    yp_h = y_pred.astype(jnp.bfloat16)
    yt_h = y_true.astype(jnp.bfloat16)
    w_h = weights.astype(jnp.bfloat16)
    out_h = wmape(yp_h, yt_h, w_h, n_splits=2)
    jax.block_until_ready(out_h)
    ref_h = wmape_ref(yp_h.astype(jnp.float32), yt_h.astype(jnp.float32),
                      w_h.astype(jnp.float32))
    assert jnp.allclose(out_h, ref_h, rtol=1e-5, atol=1e-6), (out_h, ref_h)

    print("KERNEL_OK")
</pallas_src>

<mosaic_0001>
module attributes {stable_mosaic.version = 11 : i64} {
  func.func @_wmape_kernel(%arg0: i32, %arg1: i32, %arg2: memref<16x128xf32, #tpu.memory_space<vmem>>, %arg3: memref<16x128xf32, #tpu.memory_space<vmem>>, %arg4: memref<16x128xf32, #tpu.memory_space<vmem>>, %arg5: memref<1x2x8x128xf32, #tpu.memory_space<vmem>>) attributes {dimension_semantics = [#tpu.dimension_semantics<parallel>, #tpu.dimension_semantics<arbitrary>], iteration_bounds = array<i64: 1, 1>, scalar_prefetch = 0 : i64, scratch_operands = 0 : i64, tpu.core_type = #tpu.core_type<tc>, window_params = [{transform_indices = @transform_0, window_bounds = array<i64: 16, 128>}, {transform_indices = @transform_1, window_bounds = array<i64: 16, 128>}, {transform_indices = @transform_2, window_bounds = array<i64: 16, 128>}, {transform_indices = @transform_3, window_bounds = array<i64: 1, 2, 8, 128>}]} {
    %c0_i32 = arith.constant 0 : i32
    %0 = arith.cmpi eq, %arg1, %c0_i32 : i32
    %1 = arith.extui %0 : i1 to i32
    %c0_i32_0 = arith.constant 0 : i32
    %2 = arith.cmpi ne, %1, %c0_i32_0 : i32
    scf.if %2 {
      %cst_26 = arith.constant 0.000000e+00 : f32
      %50 = vector.broadcast %cst_26 : f32 to vector<2x8x128xf32>
      %c0_27 = arith.constant 0 : index
      %c0_28 = arith.constant 0 : index
      %c0_29 = arith.constant 0 : index
      %c0_30 = arith.constant 0 : index
      %51 = vector.load %arg5[%c0_27, %c0_28, %c0_29, %c0_30] : memref<1x2x8x128xf32, #tpu.memory_space<vmem>>, vector<1x2x8x128xf32>
      %52 = vector.shape_cast %51 : vector<1x2x8x128xf32> to vector<2x8x128xf32>
      %53 = vector.shape_cast %50 : vector<2x8x128xf32> to vector<1x2x8x128xf32>
      tpu.vector_store %arg5[%c0_27, %c0_28, %c0_29, %c0_30], %53 {strides = array<i32>} : memref<1x2x8x128xf32, #tpu.memory_space<vmem>>, vector<1x2x8x128xf32>,
    } else {
    }
    %c1_i32 = arith.constant 1 : i32
    %3 = arith.muli %arg0, %c1_i32 : i32
    %4 = arith.addi %3, %arg1 : i32
    %c16_i32 = arith.constant 16 : i32
    %5 = arith.muli %4, %c16_i32 : i32
    %c0_i32_1 = arith.constant 0 : i32
    %c16_i32_2 = arith.constant 16 : i32
    %6 = arith.muli %c0_i32_1, %c16_i32_2 : i32
    %7 = tpu.assume_multiple %6, 16 : i32
    %8 = arith.index_cast %7 : i32 to index
    %c0 = arith.constant 0 : index
    %9 = vector.load %arg2[%8, %c0] : memref<16x128xf32, #tpu.memory_space<vmem>>, vector<16x128xf32>
    %10 = arith.index_cast %7 : i32 to index
    %c0_3 = arith.constant 0 : index
    %11 = vector.load %arg3[%10, %c0_3] : memref<16x128xf32, #tpu.memory_space<vmem>>, vector<16x128xf32>
    %12 = arith.index_cast %7 : i32 to index
    %c0_4 = arith.constant 0 : index
    %13 = vector.load %arg4[%12, %c0_4] : memref<16x128xf32, #tpu.memory_space<vmem>>, vector<16x128xf32>
    %14 = tpu.iota {dimensions = array<i32: 0>} : vector<16x128xi32>
    %15 = tpu.iota {dimensions = array<i32: 1>} : vector<16x128xi32>
    %c16_i32_5 = arith.constant 16 : i32
    %16 = arith.muli %c0_i32_1, %c16_i32_5 : i32
    %17 = arith.addi %5, %16 : i32
    %c128_i32 = arith.constant 128 : i32
    %18 = arith.muli %17, %c128_i32 : i32
    %c128_i32_6 = arith.constant 128 : i32
    %19 = vector.broadcast %c128_i32_6 : i32 to vector<16x128xi32>
    %20 = arith.muli %14, %19 : vector<16x128xi32>
    %21 = arith.addi %20, %15 : vector<16x128xi32>
    %22 = vector.broadcast %18 : i32 to vector<16x128xi32>
    %23 = arith.addi %21, %22 : vector<16x128xi32>
    %c2048_i32 = arith.constant 2048 : i32
    %24 = vector.broadcast %c2048_i32 : i32 to vector<16x128xi32>
    %25 = arith.cmpi slt, %23, %24 : vector<16x128xi32>
    %26 = arith.subf %9, %11 : vector<16x128xf32>
    %27 = math.absf %26 : vector<16x128xf32>
    %28 = arith.mulf %27, %13 : vector<16x128xf32>
    %cst = arith.constant 0.000000e+00 : f32
    %29 = vector.broadcast %cst : f32 to vector<16x128xf32>
    %30 = arith.select %25, %28, %29 : vector<16x128xi1>, vector<16x128xf32>
    %31 = math.absf %11 : vector<16x128xf32>
    %cst_7 = arith.constant 0.000000e+00 : f32
    %32 = vector.broadcast %cst_7 : f32 to vector<16x128xf32>
    %33 = arith.select %25, %31, %32 : vector<16x128xi1>, vector<16x128xf32>
    %c0_8 = arith.constant 0 : index
    %c0_9 = arith.constant 0 : index
    %c0_10 = arith.constant 0 : index
    %c0_11 = arith.constant 0 : index
    %34 = vector.load %arg5[%c0_8, %c0_9, %c0_10, %c0_11] : memref<1x2x8x128xf32, #tpu.memory_space<vmem>>, vector<1x1x8x128xf32>
    %35 = vector.shape_cast %34 : vector<1x1x8x128xf32> to vector<8x128xf32>
    %36 = vector.shape_cast %30 : vector<16x128xf32> to vector<2x8x128xf32>
    %cst_12 = arith.constant dense<0.000000e+00> : vector<8x128xf32>
    %37 = vector.multi_reduction <add>, %36, %cst_12 [0] : vector<2x8x128xf32> to vector<8x128xf32>
    %38 = arith.addf %35, %37 : vector<8x128xf32>
    %c0_13 = arith.constant 0 : index
    %c0_14 = arith.constant 0 : index
    %c0_15 = arith.constant 0 : index
    %c0_16 = arith.constant 0 : index
    %39 = vector.load %arg5[%c0_13, %c0_14, %c0_15, %c0_16] : memref<1x2x8x128xf32, #tpu.memory_space<vmem>>, vector<1x1x8x128xf32>
    %40 = vector.shape_cast %39 : vector<1x1x8x128xf32> to vector<8x128xf32>
    %41 = vector.shape_cast %38 : vector<8x128xf32> to vector<1x1x8x128xf32>
    tpu.vector_store %arg5[%c0_13, %c0_14, %c0_15, %c0_16], %41 {strides = array<i32>} : memref<1x2x8x128xf32, #tpu.memory_space<vmem>>, vector<1x1x8x128xf32>,
    %c0_17 = arith.constant 0 : index
    %c1 = arith.constant 1 : index
    %c0_18 = arith.constant 0 : index
    %c0_19 = arith.constant 0 : index
    %42 = vector.load %arg5[%c0_17, %c1, %c0_18, %c0_19] : memref<1x2x8x128xf32, #tpu.memory_space<vmem>>, vector<1x1x8x128xf32>
    %43 = vector.shape_cast %42 : vector<1x1x8x128xf32> to vector<8x128xf32>
    %44 = vector.shape_cast %33 : vector<16x128xf32> to vector<2x8x128xf32>
    %cst_20 = arith.constant dense<0.000000e+00> : vector<8x128xf32>
    %45 = vector.multi_reduction <add>, %44, %cst_20 [0] : vector<2x8x128xf32> to vector<8x128xf32>
    %46 = arith.addf %43, %45 : vector<8x128xf32>
    %c0_21 = arith.constant 0 : index
    %c1_22 = arith.constant 1 : index
    %c0_23 = arith.constant 0 : index
    %c0_24 = arith.constant 0 : index
    %47 = vector.load %arg5[%c0_21, %c1_22, %c0_23, %c0_24] : memref<1x2x8x128xf32, #tpu.memory_space<vmem>>, vector<1x1x8x128xf32>
    %48 = vector.shape_cast %47 : vector<1x1x8x128xf32> to vector<8x128xf32>
    %49 = vector.shape_cast %46 : vector<8x128xf32> to vector<1x1x8x128xf32>
    tpu.vector_store %arg5[%c0_21, %c1_22, %c0_23, %c0_24], %49 {strides = array<i32>} : memref<1x2x8x128xf32, #tpu.memory_space<vmem>>, vector<1x1x8x128xf32>,
    %c1_i32_25 = arith.constant 1 : i32
    return
  }
  func.func @transform_0(%arg0: i32, %arg1: i32) -> (i32, i32) {
    %c1_i32 = arith.constant 1 : i32
    %0 = arith.muli %arg0, %c1_i32 : i32
    %1 = arith.addi %0, %arg1 : i32
    %c0_i32 = arith.constant 0 : i32
    %2 = arith.minsi %1, %c0_i32 : i32
    %c0_i32_0 = arith.constant 0 : i32
    %c0_i32_1 = arith.constant 0 : i32
    return %2, %c0_i32_0 : i32, i32
  }
  func.func @transform_1(%arg0: i32, %arg1: i32) -> (i32, i32) {
    %c1_i32 = arith.constant 1 : i32
    %0 = arith.muli %arg0, %c1_i32 : i32
    %1 = arith.addi %0, %arg1 : i32
    %c0_i32 = arith.constant 0 : i32
    %2 = arith.minsi %1, %c0_i32 : i32
    %c0_i32_0 = arith.constant 0 : i32
    %c0_i32_1 = arith.constant 0 : i32
    return %2, %c0_i32_0 : i32, i32
  }
  func.func @transform_2(%arg0: i32, %arg1: i32) -> (i32, i32) {
    %c1_i32 = arith.constant 1 : i32
    %0 = arith.muli %arg0, %c1_i32 : i32
    %1 = arith.addi %0, %arg1 : i32
    %c0_i32 = arith.constant 0 : i32
    %2 = arith.minsi %1, %c0_i32 : i32
    %c0_i32_0 = arith.constant 0 : i32
    %c0_i32_1 = arith.constant 0 : i32
    return %2, %c0_i32_0 : i32, i32
  }
  func.func @transform_3(%arg0: i32, %arg1: i32) -> (i32, i32, i32, i32) {
    %c0_i32 = arith.constant 0 : i32
    %c0_i32_0 = arith.constant 0 : i32
    %c0_i32_1 = arith.constant 0 : i32
    %c0_i32_2 = arith.constant 0 : i32
    return %arg0, %c0_i32, %c0_i32_0, %c0_i32_1 : i32, i32, i32, i32
  }
}

</mosaic_0001>

<llo_original>
// kernel: tpu_custom_call.1
$region0: #{tpu_custom_call.1}
  #allocation0 [shape = 'u32[]', space=smem, size = 0x4, offset = 0x4, fixed_abs, tag = 'smem constant byte address 0x4 - core index']
  #allocation1 [shape = 'u32[144,128]{1,0:T(1,128)}', space=vmem, size = 0x12000, scoped, tag = 'internal scratch']
  %s0 = inlined_call_operand.hbm [shape: f32[16,128], index: 0, kind: input, shape index: {}]
  %s1 = inlined_call_operand.hbm [shape: f32[16,128], index: 1, kind: input, shape index: {}]
  %s2 = inlined_call_operand.hbm [shape: f32[16,128], index: 2, kind: input, shape index: {}]
  %s3 = inlined_call_operand.hbm [shape: f32[1,2,8,128], index: 3, kind: output, shape index: {}]
  %s4 = sld [smem:[#allocation0]]
  $region38: #{tpu_custom_call.1} parent=0
    _
  %s6 = ssub.s32 1, %s4
  %s7 = scalar_select 0, %s6, %s4
  $region1: #{tpu_custom_call.1} parent=0
    #allocation2 [shape = 'u8[8192]{0}', space=vmem, size = 0x2000, scoped, tag = 'input window, operand 0, single buffered']
    #allocation3 [shape = 's32[1]{0}', space=sflag, size = 0x4, scoped, tag = 'scoped memory for tpu_custom_call.1']
    #allocation4 [shape = 's32[1]{0}', space=sflag, size = 0x4, scoped, tag = 'scoped memory for tpu_custom_call.1']
    #allocation5 [shape = 'u8[8192]{0}', space=vmem, size = 0x2000, scoped, tag = 'input window, operand 1, single buffered']
    #allocation6 [shape = 's32[1]{0}', space=sflag, size = 0x4, scoped, tag = 'scoped memory for tpu_custom_call.1']
    #allocation7 [shape = 'u8[8192]{0}', space=vmem, size = 0x2000, scoped, tag = 'input window, operand 2, single buffered']
    #allocation8 [shape = 'u8[8192]{0}', space=vmem, size = 0x2000, scoped, tag = 'output window, operand 0, single buffered']
    %8 = vsyncpa [#allocation3], 0
    %9 = vsyncpa [#allocation6], 0
    %10 = vsyncpa [#allocation4], 0
    // Predicated region
    $region2: #{tpu_custom_call.1} parent=1 // pred_check
      _
    $region3: #{tpu_custom_call.1} parent=1 // pred_check_branch
      %12 = sbr.rel (0) target = $region5
    $region4: #{tpu_custom_call.1} parent=1 // pred_region
      %s13 = sadd.s32 0, 0
      %p14 = scmp.lt.s32.totalorder %s13, 0
      %s15 = scalar_select %p14, %s13, 0
      %s16 = smul.u32 2, %s15
      %s18 = ssub.s32 256, 256
      %19 = vsyncadd [#allocation3], %s18
      %s20 = smul.addr %s16, 128
      %s21 = scalar_lea.hbm %s0, %s20
      %s22 = sshll.u32 [#allocation2], 4
      %s23 = int_to_ptr.vmem [resolvable:$true] %s22
      %28 = dma.hbm_to_vmem [thread:$0]  %s21, 256, %s23, [#allocation3], 128, 128, 8
    $region5: #{tpu_custom_call.1} parent=1 // pred_fallthru
      _
    // Predicated region
    $region6: #{tpu_custom_call.1} parent=1 // pred_check
      _
    $region7: #{tpu_custom_call.1} parent=1 // pred_check_branch
      %30 = sbr.rel (0) target = $region9
    $region8: #{tpu_custom_call.1} parent=1 // pred_region
      %s31 = sadd.s32 0, 0
      %p32 = scmp.lt.s32.totalorder %s31, 0
      %s33 = scalar_select %p32, %s31, 0
      %s34 = smul.u32 2, %s33
      %s36 = ssub.s32 256, 256
      %37 = vsyncadd [#allocation6], %s36
      %s38 = smul.addr %s34, 128
      %s39 = scalar_lea.hbm %s1, %s38
      %s40 = sshll.u32 [#allocation5], 4
      %s41 = int_to_ptr.vmem [resolvable:$true] %s40
      %46 = dma.hbm_to_vmem [thread:$0]  %s39, 256, %s41, [#allocation6], 128, 128, 8
    $region9: #{tpu_custom_call.1} parent=1 // pred_fallthru
      _
    // Predicated region
    $region10: #{tpu_custom_call.1} parent=1 // pred_check
      _
    $region11: #{tpu_custom_call.1} parent=1 // pred_check_branch
      %48 = sbr.rel (0) target = $region13
    $region12: #{tpu_custom_call.1} parent=1 // pred_region
      %s49 = sadd.s32 0, 0
      %p50 = scmp.lt.s32.totalorder %s49, 0
      %s51 = scalar_select %p50, %s49, 0
      %s52 = smul.u32 2, %s51
      %s54 = ssub.s32 256, 256
      %55 = vsyncadd [#allocation6], %s54
      %s56 = smul.addr %s52, 128
      %s57 = scalar_lea.hbm %s2, %s56
      %s58 = sshll.u32 [#allocation7], 4
      %s59 = int_to_ptr.vmem [resolvable:$true] %s58
      %64 = dma.hbm_to_vmem [thread:$0]  %s57, 256, %s59, [#allocation6], 128, 128, 8
    $region13: #{tpu_custom_call.1} parent=1 // pred_fallthru
      _
    // Predicated region
    $region14: #{tpu_custom_call.1} parent=1 // pred_check
      _
    $region15: #{tpu_custom_call.1} parent=1 // pred_check_branch
      %66 = sbr.rel (0) target = $region17
    $region16: #{tpu_custom_call.1} parent=1 // pred_region
      %67 = dma.done [#allocation3], 256
    $region17: #{tpu_custom_call.1} parent=1 // pred_fallthru
      _
    // Predicated region
    $region18: #{tpu_custom_call.1} parent=1 // pred_check
      _
    $region19: #{tpu_custom_call.1} parent=1 // pred_check_branch
      %69 = sbr.rel (0) target = $region21
    $region20: #{tpu_custom_call.1} parent=1 // pred_region
      %70 = dma.done [#allocation6], 256
    $region21: #{tpu_custom_call.1} parent=1 // pred_fallthru
      _
    // Predicated region
    $region22: #{tpu_custom_call.1} parent=1 // pred_check
      _
    $region23: #{tpu_custom_call.1} parent=1 // pred_check_branch
      %72 = sbr.rel (0) target = $region25
    $region24: #{tpu_custom_call.1} parent=1 // pred_region
      %73 = dma.done [#allocation6], 256
    $region25: #{tpu_custom_call.1} parent=1 // pred_fallthru
      _
    %s74 = sadd.s32 0, 0
    %p75 = scmp.lt.s32.totalorder %s74, 0
    %s76 = scalar_select %p75, %s74, 0
    %s77 = smul.u32 2, %s76
    %s78 = sadd.s32 0, 0
    %p79 = scmp.lt.s32.totalorder %s78, 0
    %s80 = scalar_select %p79, %s78, 0
    %s81 = smul.u32 2, %s80
    %s82 = sadd.s32 0, 0
    %p83 = scmp.lt.s32.totalorder %s82, 0
    %s84 = scalar_select %p83, %s82, 0
    %s85 = smul.u32 2, %s84
    %p86 = scmp.eq.s32.totalorder 0, 0
    // Predicated region
    $region26: #{tpu_custom_call.1} parent=1 // pred_check
      %p87 = pneg %p86
    $region27: #{tpu_custom_call.1} parent=1 // pred_check_branch
      %89 = sbr.rel (%p87) target = $region29
    $region28: #{tpu_custom_call.1} parent=1 // pred_region
      %90 = vst [vmem:[#allocation8] sm:$0xff] 0.0
      %91 = vst [vmem:[#allocation8 + $0x8] sm:$0xff] 0.0
    $region29: #{tpu_custom_call.1} parent=1 // pred_fallthru
      _
    %s92 = sadd.s32 0, 0
    %v93 = vld [vmem:[#allocation2] sm:$0xff]
    %v94 = vld [vmem:[#allocation2 + $0x8] sm:$0xff]
    %v95 = vld [vmem:[#allocation5] sm:$0xff]
    %v96 = vld [vmem:[#allocation5 + $0x8] sm:$0xff]
    %v97 = vld [vmem:[#allocation7] sm:$0xff]
    %v98 = vld [vmem:[#allocation7 + $0x8] sm:$0xff]
    %v99 = vlaneseq
    %v100 = vshrl.u32 %v99, 7
    %v101 = vadd.s32 %v100, 8
    %v102 = vlaneseq
    %v103 = vand.u32 %v102, 127
    %s104 = smul.u32 %s92, 2048
    %v105 = vmul.u32 %v100, 128
    %v106 = vmul.u32 %v101, 128
    %v107 = vadd.s32 %v105, %v103
    %v108 = vadd.s32 %v106, %v103
    %v109 = vstv %s104
    %v110 = vadd.s32 %v107, %v109
    %v111 = vadd.s32 %v108, %v109
    %vm112 = vcmp.lt.s32.totalorder %v110, 2048
    %vm113 = vcmp.lt.s32.totalorder %v111, 2048
    %v114 = vsub.f32 %v93, %v95
    %v115 = vsub.f32 %v94, %v96
    %v116 = vand.u32 2147483647, %v114
    %v117 = vand.u32 2147483647, %v115
    %v118 = vmul.f32 %v116, %v97
    %v119 = vmul.f32 %v117, %v98
    %v120 = vsel %vm112, %v118, 0.0
    %v121 = vsel %vm113, %v119, 0.0
    %v122 = vand.u32 2147483647, %v95
    %v123 = vand.u32 2147483647, %v96
    %v124 = vsel %vm112, %v122, 0.0
    %v125 = vsel %vm113, %v123, 0.0
    %v126 = vld [vmem:[#allocation8] sm:$0xff]
    %v127 = vadd.f32 %v120, %v121
    %v128 = vadd.f32 %v126, %v127
    %129 = vst [vmem:[#allocation8] sm:$0xff] %v128
    %s130 = scalar_lea.vmem [#allocation8], 8
    %v131 = vld [vmem:[%s130] sm:$0xff]
    %v132 = vadd.f32 %v124, %v125
    %v133 = vadd.f32 %v131, %v132
    %134 = vst [vmem:[%s130] sm:$0xff] %v133
    // Predicated region
    $region30: #{tpu_custom_call.1} parent=1 // pred_check
      _
    $region31: #{tpu_custom_call.1} parent=1 // pred_check_branch
      %136 = sbr.rel (0) target = $region33
    $region32: #{tpu_custom_call.1} parent=1 // pred_region
      %s138 = ssub.s32 256, 256
      %139 = vsyncadd [#allocation4], %s138
      %s140 = sshll.u32 [#allocation8], 4
      %s141 = int_to_ptr.vmem [resolvable:$true] %s140
      %146 = dma.vmem_to_hbm [thread:$0]  %s141, 256, %s3, [#allocation4], 128, 128, 8
    $region33: #{tpu_custom_call.1} parent=1 // pred_fallthru
      _
    // Predicated region
    $region34: #{tpu_custom_call.1} parent=1 // pred_check
      _
    $region35: #{tpu_custom_call.1} parent=1 // pred_check_branch
      %148 = sbr.rel (0) target = $region37
    $region36: #{tpu_custom_call.1} parent=1 // pred_region
      %149 = dma.done [#allocation4], 256
    $region37: #{tpu_custom_call.1} parent=1 // pred_fallthru
      _
    %150 = vsyncpa [#allocation3], 1
    %151 = vsyncpa [#allocation6], 1
    %152 = vsyncpa [#allocation4], 1

</llo_original>
